<compile_context>
chip_gen: v7x
topology: tpu7x:2x2x1
jax: 0.10.0
libtpu: 0.0.40
codegen_flags: <defaults>
</compile_context>

<pallas_src>
import functools

import jax
import jax.numpy as jnp
from jax import lax
from jax.experimental import pallas as pl
from jax.experimental.pallas import tpu as pltpu


def _maxpool1d_kernel(x_ref, o_ref, pad_ref, *, taps, C, t_out, nL, nR, chunk,
                      s0_left, s0_right, l_fill, r_fill):
    """x_ref:  (bn, Tq, stride*C) VMEM  — stride-folded input block.
       o_ref:  (bn, t_out, C)     VMEM  — pooled output block.
       pad_ref:(bn, PS, stride*C) VMEM  — tiny zero-padded edge scratch."""

    def pool(src, s0, cc):
        # out[t] = max_k padded[t*stride + k]; tap k -> (q, r) reads
        # src[:, s0 + t + q, r*C:(r+1)*C] for t in [0, cc).
        acc = None
        for (q, r) in taps:
            v = src[:, pl.ds(s0 + q, cc), r * C:(r + 1) * C]
            acc = v if acc is None else jnp.maximum(acc, v)
        return acc

    # ---- fill the tiny edge scratch: zero 'same' halo + the few real rows
    # ---- that edge windows touch ------------------------------------------
    if nL > 0 or nR > 0:
        pad_ref[...] = jnp.zeros(pad_ref.shape, pad_ref.dtype)
        for (dst, srow, cnt) in (l_fill, r_fill):
            if cnt > 0:
                pad_ref[:, dst:dst + cnt, :] = x_ref[:, srow:srow + cnt, :]

    # ---- left edge rows (windows overlapping the left zero pad) -----------
    if nL > 0:
        o_ref[:, 0:nL, :] = pool(pad_ref, s0_left, nL)

    # ---- interior rows: every tap reads x_ref directly, no masks/copies ---
    interior = t_out - nL - nR
    if interior > 0:
        n_chunks = -(-interior // chunk)
        if n_chunks <= 16:
            for i in range(n_chunks):
                c0 = nL + i * chunk
                cc = min(chunk, t_out - nR - c0)
                o_ref[:, c0:c0 + cc, :] = pool(x_ref, c0, cc)
        else:
            n_full = interior // chunk

            @pl.loop(0, n_full)
            def _(i):
                c0 = nL + i * chunk
                o_ref[:, pl.ds(c0, chunk), :] = pool(x_ref, c0, chunk)

            rem = interior - n_full * chunk
            if rem > 0:
                c0 = nL + n_full * chunk
                o_ref[:, c0:c0 + rem, :] = pool(x_ref, c0, rem)

    # ---- right edge rows (windows overlapping the right zero pad) ---------
    if nR > 0:
        o_ref[:, t_out - nR:t_out, :] = pool(pad_ref, s0_right, nR)


def maxpool1d(x, kernel_size, stride=1, padding="same"):
    """x: [N, T, C] -> [N, T_out, C]; matches the PyTorch module exactly."""
    N, T, C = x.shape
    K = int(kernel_size)
    stride = int(stride)
    if padding == "same":
        left = (K - 1) // 2
        right = K - 1 - left
    else:
        left = right = 0
    t_out = (T + left + right - K) // stride + 1
    assert t_out >= 1

    # ---- stride folding: (N, T, C) -> (N, Tq, stride*C) --------------------
    # Free bitcast when stride divides T; otherwise pad T up (rare path; the
    # appended zeros coincide with the 'same' right-pad values, so exact).
    xr = x
    if T % stride != 0:
        xr = jnp.pad(xr, ((0, 0), (0, stride - T % stride), (0, 0)))
    Tq = xr.shape[1] // stride
    SC = stride * C
    xr = xr.reshape(N, Tq, SC)

    # ---- tap table: padded offset d = k - left -> (q, r), d = q*stride + r -
    taps = tuple((d // stride, d % stride) for d in range(-left, K - left))
    q_min = min(q for q, _ in taps)
    q_max = max(q for q, _ in taps)

    # Output rows whose windows touch the left / right zero halo.
    nL = min(t_out, max(0, -q_min))
    nR = min(t_out, max(0, t_out - (Tq - q_max)))
    SL = nL + q_max - q_min          # scratch rows for the left edge section
    SR = nR + q_max - q_min          # scratch rows for the right edge section
    PS = max(1, SL + SR)

    # Scratch fill plan: left section row j holds padded index q_min + j,
    # right section row j holds padded index R_lo + j; everything else is 0.
    l_cnt = max(0, min(nL + q_max, Tq)) if nL > 0 else 0
    l_fill = (-q_min, 0, l_cnt)
    R_lo = (t_out - nR) + q_min
    r_src = max(0, R_lo)
    r_cnt = max(0, min(SR - (r_src - R_lo), Tq - r_src)) if nR > 0 else 0
    r_fill = (SL + (r_src - R_lo), r_src, r_cnt)
    s0_left = -q_min
    s0_right = SL - q_min

    # ---- batch-block size from the chip's VMEM capacity --------------------
    itemsize = x.dtype.itemsize
    try:
        vmem_cap = int(getattr(pltpu.get_tpu_info(), "vmem_capacity_bytes"))
    except Exception:
        vmem_cap = 64 * 1024 * 1024
    budget = min((vmem_cap * 5) // 8, 64 * 1024 * 1024)   # ~40 MiB on v7x, 64 MiB on v5e/v6e
    # double-buffered input + output blocks + tiny edge scratch, per batch row
    bytes_per_row = itemsize * (2 * Tq * SC + 2 * t_out * C + PS * SC)
    bn = int(max(1, min(N, budget // max(1, bytes_per_row))))
    if bn >= N and N > 1:
        bn = pl.cdiv(N, 2)          # >= 2 grid steps keeps both v7x cores busy
    g = pl.cdiv(N, bn)
    bn = pl.cdiv(N, g)              # balance block sizes across steps
    grid = (g,)
    # TODO(synk): halo-tile T for very long sequences; this version keeps each
    # batch block's full (folded) sequence resident in VMEM.

    # ---- output-row chunk per inner step (keep acc slab <= ~16 vregs) ------
    interior = max(0, t_out - nL - nR)
    chunk = max(8, (64 * 1024) // max(1, bn * C * itemsize))
    chunk = max(1, min(chunk, interior if interior > 0 else 1))

    kernel = functools.partial(
        _maxpool1d_kernel, taps=taps, C=C, t_out=t_out, nL=nL, nR=nR,
        chunk=chunk, s0_left=s0_left, s0_right=s0_right,
        l_fill=l_fill, r_fill=r_fill)

    cost = pl.CostEstimate(
        flops=int(N * t_out * C * max(K - 1, 1)),
        transcendentals=0,
        bytes_accessed=int((N * T * C + N * t_out * C) * itemsize))

    vmem_limit = int(min(max(vmem_cap, 32 * 1024 * 1024),
                         budget + 16 * 1024 * 1024))

    return pl.pallas_call(
        kernel,
        out_shape=jax.ShapeDtypeStruct((N, t_out, C), x.dtype),
        grid_spec=pltpu.PrefetchScalarGridSpec(
            num_scalar_prefetch=0,
            grid=grid,
            in_specs=[pl.BlockSpec((bn, Tq, SC), lambda n: (n, 0, 0))],
            out_specs=pl.BlockSpec((bn, t_out, C), lambda n: (n, 0, 0)),
            scratch_shapes=[pltpu.VMEM((bn, PS, SC), x.dtype)]),
        compiler_params=pltpu.CompilerParams(
            dimension_semantics=("parallel",),
            vmem_limit_bytes=vmem_limit),
        cost_estimate=cost,
    )(xr)


def _reference(x, kernel_size, stride, padding):
    """Pure-JAX reference matching the PyTorch module (zero 'same' padding)."""
    if padding == "same":
        left = (kernel_size - 1) // 2
        right = kernel_size - 1 - left
    else:
        left = right = 0
    xp = jnp.pad(x, ((0, 0), (left, right), (0, 0)))
    return lax.reduce_window(xp, -jnp.inf, lax.max,
                             (1, kernel_size, 1), (1, stride, 1), "VALID")


if __name__ == "__main__":
    key = jax.random.PRNGKey(0)
    configs = [
        # (N, T, C, kernel_size, stride, padding)
        (2, 16, 128, 3, 2, "same"),    # main case: lane-dense C, strided
        (2, 16, 128, 3, 1, "same"),    # stride-1 path
        (2, 16, 128, 4, 2, "same"),    # even kernel -> asymmetric zero pad
        (3, 32, 256, 5, 4, "same"),    # odd N (partial batch block), stride 4
        (2, 15, 128, 3, 2, "same"),    # T not divisible by stride
        (2, 1024, 512, 3, 1, "same"),  # long T: exercises the rolled pl.loop
    ]
    for i, (N, T, C, K, S, P) in enumerate(configs):
        k = jax.random.fold_in(key, i)
        x = jax.random.normal(k, (N, T, C), dtype=jnp.float32)
        out = jax.block_until_ready(maxpool1d(x, kernel_size=K, stride=S, padding=P))
        ref = _reference(x, K, S, P)
        assert out.shape == ref.shape, (out.shape, ref.shape)
        err = float(jnp.max(jnp.abs(out - ref)))
        assert jnp.allclose(out, ref, atol=1e-6, rtol=0.0), (i, err)
    print("KERNEL_OK")
</pallas_src>

<mosaic_0001>
module attributes {stable_mosaic.version = 11 : i64} {
  func.func @_maxpool1d_kernel(%arg0: i32, %arg1: memref<1x8x256xf32, #tpu.memory_space<vmem>>, %arg2: memref<1x8x128xf32, #tpu.memory_space<vmem>>, %arg3: memref<1x3x256xf32, #tpu.memory_space<vmem>>) attributes {dimension_semantics = [#tpu.dimension_semantics<parallel>], iteration_bounds = array<i64: 2>, scalar_prefetch = 0 : i64, scratch_operands = 1 : i64, tpu.core_type = #tpu.core_type<tc>, window_params = [{transform_indices = @transform_0, window_bounds = array<i64: 1, 8, 256>}, {transform_indices = @transform_1, window_bounds = array<i64: 1, 8, 128>}]} {
    %cst = arith.constant 0.000000e+00 : f32
    %0 = vector.broadcast %cst : f32 to vector<1x3x256xf32>
    %c0 = arith.constant 0 : index
    %c0_0 = arith.constant 0 : index
    %c0_1 = arith.constant 0 : index
    %1 = vector.load %arg3[%c0, %c0_0, %c0_1] : memref<1x3x256xf32, #tpu.memory_space<vmem>>, vector<1x3x256xf32>
    tpu.vector_store %arg3[%c0, %c0_0, %c0_1], %0 {strides = array<i32>} : memref<1x3x256xf32, #tpu.memory_space<vmem>>, vector<1x3x256xf32>,
    %c0_2 = arith.constant 0 : index
    %c0_3 = arith.constant 0 : index
    %c0_4 = arith.constant 0 : index
    %2 = vector.load %arg1[%c0_2, %c0_3, %c0_4] : memref<1x8x256xf32, #tpu.memory_space<vmem>>, vector<1x1x256xf32>
    %c0_5 = arith.constant 0 : index
    %c1 = arith.constant 1 : index
    %c0_6 = arith.constant 0 : index
    %3 = vector.load %arg3[%c0_5, %c1, %c0_6] : memref<1x3x256xf32, #tpu.memory_space<vmem>>, vector<1x1x256xf32>
    tpu.vector_store %arg3[%c0_5, %c1, %c0_6], %2 {strides = array<i32>} : memref<1x3x256xf32, #tpu.memory_space<vmem>>, vector<1x1x256xf32>,
    %c0_7 = arith.constant 0 : index
    %c0_8 = arith.constant 0 : index
    %c128 = arith.constant 128 : index
    %4 = vector.load %arg3[%c0_7, %c0_8, %c128] : memref<1x3x256xf32, #tpu.memory_space<vmem>>, vector<1x1x128xf32>
    %c0_9 = arith.constant 0 : index
    %c1_10 = arith.constant 1 : index
    %c0_11 = arith.constant 0 : index
    %5 = vector.load %arg3[%c0_9, %c1_10, %c0_11] : memref<1x3x256xf32, #tpu.memory_space<vmem>>, vector<1x1x128xf32>
    %6 = arith.maximumf %4, %5 : vector<1x1x128xf32>
    %c0_12 = arith.constant 0 : index
    %c1_13 = arith.constant 1 : index
    %c128_14 = arith.constant 128 : index
    %7 = vector.load %arg3[%c0_12, %c1_13, %c128_14] : memref<1x3x256xf32, #tpu.memory_space<vmem>>, vector<1x1x128xf32>
    %8 = arith.maximumf %6, %7 : vector<1x1x128xf32>
    %c0_15 = arith.constant 0 : index
    %c0_16 = arith.constant 0 : index
    %c0_17 = arith.constant 0 : index
    %9 = vector.load %arg2[%c0_15, %c0_16, %c0_17] : memref<1x8x128xf32, #tpu.memory_space<vmem>>, vector<1x1x128xf32>
    tpu.vector_store %arg2[%c0_15, %c0_16, %c0_17], %8 {strides = array<i32>} : memref<1x8x128xf32, #tpu.memory_space<vmem>>, vector<1x1x128xf32>,
    %c0_18 = arith.constant 0 : index
    %c0_19 = arith.constant 0 : index
    %c128_20 = arith.constant 128 : index
    %10 = vector.load %arg1[%c0_18, %c0_19, %c128_20] : memref<1x8x256xf32, #tpu.memory_space<vmem>>, vector<1x7x128xf32>
    %c0_21 = arith.constant 0 : index
    %c1_22 = arith.constant 1 : index
    %c0_23 = arith.constant 0 : index
    %11 = vector.load %arg1[%c0_21, %c1_22, %c0_23] : memref<1x8x256xf32, #tpu.memory_space<vmem>>, vector<1x7x128xf32>
    %12 = arith.maximumf %10, %11 : vector<1x7x128xf32>
    %c0_24 = arith.constant 0 : index
    %c1_25 = arith.constant 1 : index
    %c128_26 = arith.constant 128 : index
    %13 = vector.load %arg1[%c0_24, %c1_25, %c128_26] : memref<1x8x256xf32, #tpu.memory_space<vmem>>, vector<1x7x128xf32>
    %14 = arith.maximumf %12, %13 : vector<1x7x128xf32>
    %c0_27 = arith.constant 0 : index
    %c1_28 = arith.constant 1 : index
    %c0_29 = arith.constant 0 : index
    %15 = vector.load %arg2[%c0_27, %c1_28, %c0_29] : memref<1x8x128xf32, #tpu.memory_space<vmem>>, vector<1x7x128xf32>
    tpu.vector_store %arg2[%c0_27, %c1_28, %c0_29], %14 {strides = array<i32>} : memref<1x8x128xf32, #tpu.memory_space<vmem>>, vector<1x7x128xf32>,
    return
  }
  func.func @transform_0(%arg0: i32) -> (i32, i32, i32) {
    %c0_i32 = arith.constant 0 : i32
    %c0_i32_0 = arith.constant 0 : i32
    %c0_i32_1 = arith.constant 0 : i32
    return %arg0, %c0_i32, %c0_i32_0 : i32, i32, i32
  }
  func.func @transform_1(%arg0: i32) -> (i32, i32, i32) {
    %c0_i32 = arith.constant 0 : i32
    %c0_i32_0 = arith.constant 0 : i32
    %c0_i32_1 = arith.constant 0 : i32
    return %arg0, %c0_i32, %c0_i32_0 : i32, i32, i32
  }
}

</mosaic_0001>

<llo_original>
// kernel: tpu_custom_call.1
$region0: #{tpu_custom_call.1}
  #allocation0 [shape = 'u32[]', space=smem, size = 0x4, offset = 0x4, fixed_abs, tag = 'smem constant byte address 0x4 - core index']
  #allocation1 [shape = 'u32[144,128]{1,0:T(1,128)}', space=vmem, size = 0x12000, scoped, tag = 'internal scratch']
  #allocation2 [shape = 'f32[1,3,256]{2,1,0:T(4,128)}', space=vmem, size = 0x1000, scoped, tag = 'scratch operand']
  %s0 = inlined_call_operand.hbm [shape: f32[2,8,256], index: 0, kind: input, shape index: {}]
  %s1 = inlined_call_operand.hbm [shape: f32[2,8,128], index: 1, kind: output, shape index: {}]
  %s2 = sld [smem:[#allocation0]]
  $region41: #{tpu_custom_call.1} parent=0
    _
  %s4 = ssub.s32 1, %s2
  %s5 = scalar_select 0, %s4, %s2
  $region1: #{tpu_custom_call.1} parent=0
    #allocation3 [shape = 'u8[16384]{0}', space=vmem, size = 0x4000, scoped, tag = 'input window, operand 0']
    #allocation4 [shape = 's32[2]{0}', space=sflag, size = 0x8, scoped, tag = 'scoped memory for tpu_custom_call.1']
    #allocation5 [shape = 's32[2]{0}', space=sflag, size = 0x8, scoped, tag = 'scoped memory for tpu_custom_call.1']
    #allocation6 [shape = 'u8[8192]{0}', space=vmem, size = 0x2000, scoped, tag = 'output window, operand 0']
    %6 = vsyncpa [#allocation4], 0
    %s7 = scalar_lea.sflag [#allocation4], 1
    %8 = vsyncpa %s7, 0
    %9 = vsyncpa [#allocation5], 0
    %s10 = scalar_lea.sflag [#allocation5], 1
    %11 = vsyncpa %s10, 0
    loop: start=0, step=1, limit=4
    $region2: #{tpu_custom_call.1} parent=1 // loop_pre_header
      _
    $region3: #{tpu_custom_call.1} parent=1 // loop_header
      %s13 = sphi 0, %s17
      %p14 = scmp.ge.s32.totalorder %s13, 4
      %s23 = sphi 0, %s25
      %s26 = sphi 0, %s23
      %s27 = sphi 0, %s26
      %s43 = sphi 0, %s27
      %s49 = sphi 0, %s51
      %s52 = sphi 0, %s49
      %s53 = sphi 0, %s52
      %s69 = sphi 0, %s53
    $region4: #{tpu_custom_call.1} parent=1 // loop_header_branch
      %16 = sbr.rel (%p14) target = $region8
    $region5: #{tpu_custom_call.1} parent=1 // loop_body
      %s18 = ssub.s32 %s13, 1
      %s19 = ssub.s32 %s13, 2
      %s20 = sadd.s32 %s13, 1
      %s21 = ssub.s32 %s13, %s20
      %p22 = scmp.eq.s32.totalorder %s21, 0
      %s24 = sadd.s32 %s23, 1
      %s25 = scalar_select %p22, %s23, %s24
      %p28 = pneg %p22
      %p29 = scmp.eq.s32.totalorder %s13, 1
      %p30 = por %p28, %p29
      %p31 = scmp.ne.s32.totalorder %s23, %s26
      %p32 = scmp.eq.s32.totalorder %s13, 0
      %p33 = por %p31, %p32
      %p34 = scmp.ne.s32.totalorder %s23, %s26
      %p35 = scmp.eq.s32.totalorder %s18, 1
      %p36 = por %p34, %p35
      %p37 = scmp.ne.s32.totalorder %s26, %s27
      %p38 = scmp.eq.s32.totalorder %s18, 0
      %p39 = por %p37, %p38
      %p40 = scmp.ne.s32.totalorder %s26, %s27
      %p41 = scmp.eq.s32.totalorder %s19, 1
      %p42 = por %p40, %p41
      %p44 = scmp.ne.s32.totalorder %s27, %s43
      %p45 = scmp.eq.s32.totalorder %s19, 0
      %p46 = por %p44, %p45
      %s47 = ssub.s32 %s13, %s20
      %p48 = scmp.eq.s32.totalorder %s47, 0
      %s50 = sadd.s32 %s49, 1
      %s51 = scalar_select %p48, %s49, %s50
      %p54 = pneg %p48
      %p55 = scmp.eq.s32.totalorder %s13, 1
      %p56 = por %p54, %p55
      %p57 = scmp.ne.s32.totalorder %s49, %s52
      %p58 = scmp.eq.s32.totalorder %s13, 0
      %p59 = por %p57, %p58
      %p60 = scmp.ne.s32.totalorder %s49, %s52
      %p61 = scmp.eq.s32.totalorder %s18, 1
      %p62 = por %p60, %p61
      %p63 = scmp.ne.s32.totalorder %s52, %s53
      %p64 = scmp.eq.s32.totalorder %s18, 0
      %p65 = por %p63, %p64
      %p66 = scmp.ne.s32.totalorder %s52, %s53
      %p67 = scmp.eq.s32.totalorder %s19, 1
      %p68 = por %p66, %p67
      %p70 = scmp.ne.s32.totalorder %s53, %s69
      %p71 = scmp.eq.s32.totalorder %s19, 0
      %p72 = por %p70, %p71
      %p73 = scmp.le.s32.totalorder 1, %s13
      %p74 = scmp.lt.s32.totalorder %s13, 3
      %p75 = pnand %p73, %p74
      %p76 = pneg %p75
      // Predicated region
      $region9: #{tpu_custom_call.1} parent=5 // pred_check
        _
      $region10: #{tpu_custom_call.1} parent=5 // pred_check_branch
        %78 = sbr.rel (%p75) target = $region12
      $region11: #{tpu_custom_call.1} parent=5 // pred_region
        %s79 = ssub.s32 %s13, 1
      $region12: #{tpu_custom_call.1} parent=5 // pred_fallthru
        _
      %p80 = scmp.lt.s32.totalorder %s13, 2
      // Predicated region
      $region13: #{tpu_custom_call.1} parent=5 // pred_check
        %p81 = pneg %p80
      $region14: #{tpu_custom_call.1} parent=5 // pred_check_branch
        %83 = sbr.rel (%p81) target = $region16
      $region15: #{tpu_custom_call.1} parent=5 // pred_region
        // Predicated region
        $region17: #{tpu_custom_call.1} parent=15 // pred_check
          %p84 = pneg %p33
        $region18: #{tpu_custom_call.1} parent=15 // pred_check_branch
          %86 = sbr.rel (%p84) target = $region20
        $region19: #{tpu_custom_call.1} parent=15 // pred_region
          %s87 = sand.u32 %s23, 1
          %s88 = scalar_lea.sflag [#allocation4], %s87
          %s89 = sand.u32 %s23, 1
          %s90 = smul.addr %s89, 16
          %s91 = scalar_lea.vmem [#allocation3], %s90
          %s93 = ssub.s32 256, 256
          %94 = vsyncadd %s88, %s93
          %s95 = smul.addr %s13, 2
          %s96 = smul.addr %s95, 128
          %s97 = scalar_lea.hbm %s0, %s96
          %s99 = sshll.u32 %s91, 4
          %s100 = int_to_ptr.vmem [resolvable:$true] %s99
          %102 = dma.hbm_to_vmem [thread:$0]  %s97, 256, %s100, %s88
        $region20: #{tpu_custom_call.1} parent=15 // pred_fallthru
          _
      $region16: #{tpu_custom_call.1} parent=5 // pred_fallthru
        _
      %p103 = scmp.le.s32.totalorder 1, %s13
      %p104 = scmp.lt.s32.totalorder %s13, 3
      %p105 = pnand %p103, %p104
      %p106 = pneg %p105
      // Predicated region
      $region21: #{tpu_custom_call.1} parent=5 // pred_check
        _
      $region22: #{tpu_custom_call.1} parent=5 // pred_check_branch
        %108 = sbr.rel (%p105) target = $region24
      $region23: #{tpu_custom_call.1} parent=5 // pred_region
        %s109 = ssub.s32 %s13, 1
        %s110 = sand.u32 %s26, 1
        %s111 = scalar_lea.sflag [#allocation4], %s110
        %s112 = sand.u32 %s26, 1
        %s113 = smul.addr %s112, 16
        %s114 = scalar_lea.vmem [#allocation3], %s113
        // Predicated region
        $region25: #{tpu_custom_call.1} parent=23 // pred_check
          %p115 = pneg %p39
        $region26: #{tpu_custom_call.1} parent=23 // pred_check_branch
          %117 = sbr.rel (%p115) target = $region28
        $region27: #{tpu_custom_call.1} parent=23 // pred_region
          %118 = dma.done %s111, 256
        $region28: #{tpu_custom_call.1} parent=23 // pred_fallthru
          _
        %s119 = sand.u32 %s26, 1
        %s120 = scalar_lea.sflag [#allocation4], %s119
        %s121 = sand.u32 %s26, 1
        %s122 = smul.addr %s121, 16
        %s123 = scalar_lea.vmem [#allocation3], %s122
        %p124 = pneg %p39
        %p125 = pneg %p36
        %p126 = pneg %p65
        %p127 = pneg %p62
        %s128 = sand.u32 %s52, 1
        %s129 = scalar_lea.sflag [#allocation5], %s128
        %s130 = sand.u32 %s52, 1
        %s131 = smul.addr %s130, 8
        %s132 = scalar_lea.vmem [#allocation6], %s131
        %133 = vst [vmem:[#allocation2] sm:$0x77] 0.0
        %v134 = vld [vmem:[%s114] ss:$8 sm:$0x3]
        %v135 = vlaneseq
        %vm136 = vcmp.ge.s32.totalorder %v135, 0
        %vm137 = vcmp.lt.s32.totalorder %v135, 256
        %vm138 = vmand %vm136, %vm137
        %s139 = scalar_lea.vmem [#allocation2], 1
        %140 = vst.msk [vmem:[%s139] ss:$4 sm:$0x3] %vm138, %v134
        %v141 = vld [vmem:[#allocation2 + $0x4] sm:$0x1]
        %v142 = vld [vmem:[#allocation2 + $0x1] sm:$0x1]
        %v143 = vmax.f32 %v141, %v142
        %v144 = vld [vmem:[#allocation2 + $0x5] sm:$0x1]
        %v145 = vmax.f32 %v143, %v144
        %146 = vst [vmem:[%s132] sm:$0x1] %v145
        %v147 = vld [vmem:[%s114 + $0x8] sm:$0x7f]
        %v148 = vld [vmem:[%s114] sm:$0xfe]
        %v150 = vrot.slane %v148, 1
        %v152 = vmax.f32 %v147, %v150
        %v153 = vld [vmem:[%s114 + $0x8] sm:$0xfe]
        %v155 = vrot.slane %v153, 1
        %v157 = vmax.f32 %v152, %v155
        %158 = vst [vmem:[%s132 + $0x1] sm:$0x7f] %v157
        %s159 = sand.u32 %s52, 1
        %s160 = scalar_lea.sflag [#allocation5], %s159
        %s161 = sand.u32 %s52, 1
        %s162 = smul.addr %s161, 8
        %s163 = scalar_lea.vmem [#allocation6], %s162
        // Predicated region
        $region29: #{tpu_custom_call.1} parent=23 // pred_check
          %p164 = pneg %p62
        $region30: #{tpu_custom_call.1} parent=23 // pred_check_branch
          %166 = sbr.rel (%p164) target = $region32
        $region31: #{tpu_custom_call.1} parent=23 // pred_region
          %s168 = ssub.s32 128, 128
          %169 = vsyncadd %s160, %s168
          %s170 = smul.addr %s18, 128
          %s171 = scalar_lea.hbm %s1, %s170
          %s173 = sshll.u32 %s163, 4
          %s174 = int_to_ptr.vmem [resolvable:$true] %s173
          %176 = dma.vmem_to_hbm [thread:$0]  %s174, 128, %s171, %s160
        $region32: #{tpu_custom_call.1} parent=23 // pred_fallthru
          _
      $region24: #{tpu_custom_call.1} parent=5 // pred_fallthru
        _
      %p177 = scmp.le.s32.totalorder 2, %s13
      // Predicated region
      $region33: #{tpu_custom_call.1} parent=5 // pred_check
        %p178 = pneg %p177
      $region34: #{tpu_custom_call.1} parent=5 // pred_check_branch
        %180 = sbr.rel (%p178) target = $region36
      $region35: #{tpu_custom_call.1} parent=5 // pred_region
        %s181 = ssub.s32 %s13, 2
        // Predicated region
        $region37: #{tpu_custom_call.1} parent=35 // pred_check
          %p182 = pneg %p68
        $region38: #{tpu_custom_call.1} parent=35 // pred_check_branch
          %184 = sbr.rel (%p182) target = $region40
        $region39: #{tpu_custom_call.1} parent=35 // pred_region
          %s185 = sand.u32 %s53, 1
          %s186 = scalar_lea.sflag [#allocation5], %s185
          %s187 = sand.u32 %s53, 1
          %s188 = smul.addr %s187, 8
          %s189 = scalar_lea.vmem [#allocation6], %s188
          %190 = dma.done %s186, 128
        $region40: #{tpu_custom_call.1} parent=35 // pred_fallthru
          _
      $region36: #{tpu_custom_call.1} parent=5 // pred_fallthru
        _
    $region6: #{tpu_custom_call.1} parent=1 // loop_footer
      %s17 = sadd.s32 1, %s13
    $region7: #{tpu_custom_call.1} parent=1 // loop_footer_branch
      %12 = sbr.rel target = $region3
    $region8: #{tpu_custom_call.1} parent=1 // loop_exit
      _
    %191 = vsyncpa [#allocation4], 1
    %s192 = scalar_lea.sflag [#allocation4], 1
    %193 = vsyncpa %s192, 1
    %194 = vsyncpa [#allocation5], 1
    %s195 = scalar_lea.sflag [#allocation5], 1
    %196 = vsyncpa %s195, 1

</llo_original>
